<compile_context>
chip_gen: v6e
topology: v6e:2x2x1
jax: 0.10.0
libtpu: 0.0.40
codegen_flags: <defaults>
</compile_context>

<pallas_src>
import functools

import jax
import jax.numpy as jnp
from jax import lax
from jax.experimental import pallas as pl
from jax.experimental.pallas import tpu as pltpu


# Conservative VMEM budget that leaves headroom on every generation
# (v7x has only 64 MiB physical VMEM per TensorCore).
_DEFAULT_VMEM_LIMIT = 48 * 1024 * 1024


def _kv_proj_kernel(x_ref, wkv_ref, k_ref, v_ref, *, d_model: int):
    # x_ref: (1, ts, D); wkv_ref: (D, 2D) resident; outputs: (1, ts, D) each.
    x = x_ref[0]                                            # native dtype
    # Two separate matmuls with immediate cast+store: avoids keeping a full
    # f32 (ts, 2D) intermediate live (lower VMEM / vreg pressure).
    k_ref[0] = jnp.dot(x, wkv_ref[:, :d_model],
                       preferred_element_type=jnp.float32).astype(k_ref.dtype)
    v_ref[0] = jnp.dot(x, wkv_ref[:, d_model:],
                       preferred_element_type=jnp.float32).astype(v_ref.dtype)


def _flash_attn_kernel(x_ref, k_ref, v_ref, wq_ref, wo_ref, o_ref,
                       q_sc, m_sc, l_sc, acc_sc,
                       *, num_heads: int, d_k: int, scale: float):
    # x_ref: (1, tq, D); k_ref/v_ref: (1, tk, D); wq_ref/wo_ref: (D, D)
    # o_ref: (1, tq, D)
    # q_sc: (tq, D) x-dtype; m_sc/l_sc: (H, tq, 1) f32; acc_sc: (tq, D) f32
    ki = pl.program_id(2)

    @pl.when(ki == 0)
    def _init():
        # Fused Q projection: computed once per (batch, q-tile) and kept in
        # VMEM scratch for the whole kv sweep (Q never touches HBM).
        # The 1/sqrt(d_k) scale is folded into Q so it is not re-applied to
        # every (tq, tk) score tile.
        q = jnp.dot(x_ref[0], wq_ref[...],
                    preferred_element_type=jnp.float32) * scale
        q_sc[...] = q.astype(q_sc.dtype)
        m_sc[...] = jnp.full_like(m_sc, -jnp.inf)
        l_sc[...] = jnp.zeros_like(l_sc)
        acc_sc[...] = jnp.zeros_like(acc_sc)

    k = k_ref[0]                                            # (tk, D)
    v = v_ref[0]                                            # (tk, D)

    # Static loop over heads: small matmuls on static column slices instead
    # of reshape/transpose head splitting (keeps work off the XLU).
    for h in range(num_heads):
        cols = slice(h * d_k, (h + 1) * d_k)
        qh = q_sc[:, cols]                                  # (tq, d_k)
        kh = k[:, cols]                                     # (tk, d_k)
        vh = v[:, cols]                                     # (tk, d_k)

        # scores tile: (tq, tk), contraction over d_k (no explicit transpose).
        s = lax.dot_general(qh, kh, (((1,), (1,)), ((), ())),
                            preferred_element_type=jnp.float32)

        m_prev = m_sc[h]                                    # (tq, 1)
        m_new = jnp.maximum(m_prev, jnp.max(s, axis=-1, keepdims=True))
        alpha = jnp.exp(m_prev - m_new)                     # rescale old state
        p = jnp.exp(s - m_new)                              # (tq, tk) f32

        l_sc[h] = alpha * l_sc[h] + jnp.sum(p, axis=-1, keepdims=True)
        # Lane-dense accumulator: head h occupies lanes [h*d_k, (h+1)*d_k).
        acc_sc[:, cols] = alpha * acc_sc[:, cols] + jnp.dot(
            p.astype(vh.dtype), vh, preferred_element_type=jnp.float32)
        m_sc[h] = m_new

    @pl.when(ki == pl.num_programs(2) - 1)
    def _finalize():
        # Normalize each head's column slice in place; the accumulator is
        # already the concatenated (tq, D) attention output, so no concat /
        # XLU work is needed before the fused output projection.
        for h in range(num_heads):
            cols = slice(h * d_k, (h + 1) * d_k)
            inv_l = 1.0 / l_sc[h]        # exact: runs once per q tile -> free
            acc_sc[:, cols] = acc_sc[:, cols] * inv_l
        y = jnp.dot(acc_sc[...].astype(wo_ref.dtype), wo_ref[...],
                    preferred_element_type=jnp.float32)     # (tq, D)
        o_ref[0] = y.astype(o_ref.dtype)


def fuse_attention_weights(wq, wk, wv, wo, dtype):
    """One-time weight prep (hoist out of the per-call path).

    PyTorch Linear weights are (out, in); transpose to (in, out), fuse K/V
    into a single (D, 2D) matrix, and cast to the activation dtype so bf16
    activations hit the MXU with bf16 weights.
    """
    wq_t = wq.T.astype(dtype)                               # (D, D)
    wkv = jnp.concatenate([wk.T, wv.T], axis=1).astype(dtype)   # (D, 2D)
    wo_t = wo.T.astype(dtype)                               # (D, D)
    return wq_t, wkv, wo_t


def streaming_monitored_attention_fused(
        x, wq_t, wkv, wo_t, *, num_heads: int,
        block_q: int = 256, block_kv: int = 256, block_proj: int = 256,
        vmem_limit_bytes: int = _DEFAULT_VMEM_LIMIT):
    """Forward pass with pre-fused weights (see fuse_attention_weights)."""
    B, S, D = x.shape
    assert D % num_heads == 0
    d_k = D // num_heads

    bq = min(block_q, S)
    bkv = min(block_kv, S)
    bp = min(block_proj, S)
    # TODO(synk): no padding path for sequence lengths that do not divide the
    # tile sizes; real streaming shapes would need a masked tail tile.
    assert S % bq == 0 and S % bkv == 0 and S % bp == 0, \
        "seq_len must divide the tile sizes"

    # ---- Kernel 1: K/V projection (VMEM-resident fused weight) -------------
    kv_kernel = functools.partial(_kv_proj_kernel, d_model=D)
    row_spec = lambda b, i: (b, i, 0)
    k, v = pl.pallas_call(
        kv_kernel,
        out_shape=(jax.ShapeDtypeStruct((B, S, D), x.dtype),
                   jax.ShapeDtypeStruct((B, S, D), x.dtype)),
        grid_spec=pltpu.PrefetchScalarGridSpec(
            num_scalar_prefetch=0,
            grid=(B, S // bp),
            in_specs=[
                pl.BlockSpec((1, bp, D), row_spec),
                # Constant index_map => weight stays resident; Buffered(1)
                # keeps a single copy instead of a useless double buffer.
                pl.BlockSpec((D, 2 * D), lambda b, i: (0, 0),
                             pipeline_mode=pl.Buffered(1)),
            ],
            out_specs=[
                pl.BlockSpec((1, bp, D), row_spec),
                pl.BlockSpec((1, bp, D), row_spec),
            ],
        ),
        compiler_params=pltpu.CompilerParams(
            dimension_semantics=("parallel", "parallel"),
            vmem_limit_bytes=vmem_limit_bytes),
    )(x, wkv)

    # ---- Kernel 2: fused Q-proj + flash attention + output projection ------
    flash_kernel = functools.partial(
        _flash_attn_kernel, num_heads=num_heads, d_k=d_k,
        scale=1.0 / (d_k ** 0.5))

    out = pl.pallas_call(
        flash_kernel,
        out_shape=jax.ShapeDtypeStruct((B, S, D), x.dtype),
        grid_spec=pltpu.PrefetchScalarGridSpec(
            num_scalar_prefetch=0,
            grid=(B, S // bq, S // bkv),
            in_specs=[
                # x q-tile: block index constant over ki => fetched once per
                # (batch, q-tile), consumed only at ki == 0.
                pl.BlockSpec((1, bq, D), lambda b, qi, ki: (b, qi, 0)),
                pl.BlockSpec((1, bkv, D), lambda b, qi, ki: (b, ki, 0)),
                pl.BlockSpec((1, bkv, D), lambda b, qi, ki: (b, ki, 0)),
                pl.BlockSpec((D, D), lambda b, qi, ki: (0, 0),
                             pipeline_mode=pl.Buffered(1)),   # Wq resident
                pl.BlockSpec((D, D), lambda b, qi, ki: (0, 0),
                             pipeline_mode=pl.Buffered(1)),   # Wo resident
            ],
            out_specs=pl.BlockSpec((1, bq, D), lambda b, qi, ki: (b, qi, 0)),
            scratch_shapes=[
                pltpu.VMEM((bq, D), x.dtype),                 # projected Q
                pltpu.VMEM((num_heads, bq, 1), jnp.float32),  # running max
                pltpu.VMEM((num_heads, bq, 1), jnp.float32),  # running denom
                pltpu.VMEM((bq, D), jnp.float32),             # lane-dense acc
            ]),
        compiler_params=pltpu.CompilerParams(
            # batch and q axes "parallel" so both v7x TensorCores get work.
            dimension_semantics=("parallel", "parallel", "arbitrary"),
            vmem_limit_bytes=vmem_limit_bytes),
    )(x, k, v, wq_t, wo_t)

    return out


def streaming_monitored_attention(x, wq, wk, wv, wo, *, num_heads: int, **kw):
    """Convenience wrapper taking raw PyTorch-style (out, in) weights.

    For repeated calls, hoist fuse_attention_weights to module init and call
    streaming_monitored_attention_fused directly.
    """
    wq_t, wkv, wo_t = fuse_attention_weights(wq, wk, wv, wo, x.dtype)
    return streaming_monitored_attention_fused(
        x, wq_t, wkv, wo_t, num_heads=num_heads, **kw)


def _reference(x, wq, wk, wv, wo, *, num_heads: int):
    B, S, D = x.shape
    d_k = D // num_heads
    q = (x @ wq.T).reshape(B, S, num_heads, d_k).transpose(0, 2, 1, 3)
    k = (x @ wk.T).reshape(B, S, num_heads, d_k).transpose(0, 2, 1, 3)
    v = (x @ wv.T).reshape(B, S, num_heads, d_k).transpose(0, 2, 1, 3)
    scores = jnp.einsum('bhqd,bhkd->bhqk', q, k) / (d_k ** 0.5)
    w = jax.nn.softmax(scores, axis=-1)
    out = jnp.einsum('bhqk,bhkd->bhqd', w, v)
    out = out.transpose(0, 2, 1, 3).reshape(B, S, D)
    return out @ wo.T


def _run_case(key, B, S, D, H, **kernel_kwargs):
    kx, kq, kk, kv, ko = jax.random.split(key, 5)
    x = jax.random.normal(kx, (B, S, D), dtype=jnp.float32)
    bound = 1.0 / (D ** 0.5)
    wq = jax.random.uniform(kq, (D, D), jnp.float32, -bound, bound)
    wk = jax.random.uniform(kk, (D, D), jnp.float32, -bound, bound)
    wv = jax.random.uniform(kv, (D, D), jnp.float32, -bound, bound)
    wo = jax.random.uniform(ko, (D, D), jnp.float32, -bound, bound)

    out = streaming_monitored_attention(x, wq, wk, wv, wo, num_heads=H,
                                        **kernel_kwargs)
    out = jax.block_until_ready(out)
    ref = _reference(x, wq, wk, wv, wo, num_heads=H)
    assert out.shape == (B, S, D)
    assert jnp.allclose(out, ref, atol=2e-3, rtol=2e-3), (
        f"max abs diff: {jnp.max(jnp.abs(out - ref))}")


if __name__ == "__main__":
    key = jax.random.PRNGKey(0)
    k_small, k_big = jax.random.split(key, 2)

    # Small shape consistent with the module (single tile per axis).
    _run_case(k_small, B=2, S=8, D=32, H=4)

    # Multi-tile shape: exercises the online-softmax accumulation across
    # several kv tiles, several q tiles, and (8,128)-aligned blocks.
    _run_case(k_big, B=2, S=256, D=256, H=4,
              block_q=128, block_kv=128, block_proj=128)

    print("KERNEL_OK")
</pallas_src>

<mosaic_0001>
module attributes {stable_mosaic.version = 11 : i64} {
  func.func @_kv_proj_kernel(%arg0: i32, %arg1: i32, %arg2: memref<1x8x32xf32, #tpu.memory_space<vmem>>, %arg3: memref<32x64xf32, #tpu.memory_space<vmem>>, %arg4: memref<1x8x32xf32, #tpu.memory_space<vmem>>, %arg5: memref<1x8x32xf32, #tpu.memory_space<vmem>>) attributes {dimension_semantics = [#tpu.dimension_semantics<parallel>, #tpu.dimension_semantics<parallel>], iteration_bounds = array<i64: 2, 1>, scalar_prefetch = 0 : i64, scratch_operands = 0 : i64, tpu.core_type = #tpu.core_type<tc>, window_params = [{transform_indices = @transform_0, window_bounds = array<i64: 1, 8, 32>}, {pipeline_mode = #tpu.pipeline_mode<synchronous>, transform_indices = @transform_1, window_bounds = array<i64: 32, 64>}, {transform_indices = @transform_2, window_bounds = array<i64: 1, 8, 32>}, {transform_indices = @transform_3, window_bounds = array<i64: 1, 8, 32>}]} {
    %c0 = arith.constant 0 : index
    %c0_0 = arith.constant 0 : index
    %c0_1 = arith.constant 0 : index
    %0 = vector.load %arg2[%c0, %c0_0, %c0_1] : memref<1x8x32xf32, #tpu.memory_space<vmem>>, vector<1x8x32xf32>
    %1 = vector.shape_cast %0 : vector<1x8x32xf32> to vector<8x32xf32>
    %c0_2 = arith.constant 0 : index
    %c0_3 = arith.constant 0 : index
    %2 = vector.load %arg3[%c0_2, %c0_3] : memref<32x64xf32, #tpu.memory_space<vmem>>, vector<32x32xf32>
    %cst = arith.constant dense<0.000000e+00> : vector<8x32xf32>
    %3 = tpu.matmul %1, %2, %cst {dimension_numbers = #tpu.dot_dimension_numbers<[1], [0], [0], [1], [0, 0, 1, 1], [], []>} : vector<8x32xf32>, vector<32x32xf32>, vector<8x32xf32> -> vector<8x32xf32>
    %c0_4 = arith.constant 0 : index
    %c0_5 = arith.constant 0 : index
    %c0_6 = arith.constant 0 : index
    %4 = vector.load %arg4[%c0_4, %c0_5, %c0_6] : memref<1x8x32xf32, #tpu.memory_space<vmem>>, vector<1x8x32xf32>
    %5 = vector.shape_cast %4 : vector<1x8x32xf32> to vector<8x32xf32>
    %6 = vector.shape_cast %3 : vector<8x32xf32> to vector<1x8x32xf32>
    tpu.vector_store %arg4[%c0_4, %c0_5, %c0_6], %6 {strides = array<i32>} : memref<1x8x32xf32, #tpu.memory_space<vmem>>, vector<1x8x32xf32>,
    %c0_7 = arith.constant 0 : index
    %c32 = arith.constant 32 : index
    %7 = vector.load %arg3[%c0_7, %c32] : memref<32x64xf32, #tpu.memory_space<vmem>>, vector<32x32xf32>
    %cst_8 = arith.constant dense<0.000000e+00> : vector<8x32xf32>
    %8 = tpu.matmul %1, %7, %cst_8 {dimension_numbers = #tpu.dot_dimension_numbers<[1], [0], [0], [1], [0, 0, 1, 1], [], []>} : vector<8x32xf32>, vector<32x32xf32>, vector<8x32xf32> -> vector<8x32xf32>
    %c0_9 = arith.constant 0 : index
    %c0_10 = arith.constant 0 : index
    %c0_11 = arith.constant 0 : index
    %9 = vector.load %arg5[%c0_9, %c0_10, %c0_11] : memref<1x8x32xf32, #tpu.memory_space<vmem>>, vector<1x8x32xf32>
    %10 = vector.shape_cast %9 : vector<1x8x32xf32> to vector<8x32xf32>
    %11 = vector.shape_cast %8 : vector<8x32xf32> to vector<1x8x32xf32>
    tpu.vector_store %arg5[%c0_9, %c0_10, %c0_11], %11 {strides = array<i32>} : memref<1x8x32xf32, #tpu.memory_space<vmem>>, vector<1x8x32xf32>,
    return
  }
  func.func @transform_0(%arg0: i32, %arg1: i32) -> (i32, i32, i32) {
    %c0_i32 = arith.constant 0 : i32
    %c0_i32_0 = arith.constant 0 : i32
    return %arg0, %arg1, %c0_i32 : i32, i32, i32
  }
  func.func @transform_1(%arg0: i32, %arg1: i32) -> (i32, i32) {
    %c0_i32 = arith.constant 0 : i32
    %c0_i32_0 = arith.constant 0 : i32
    %c0_i32_1 = arith.constant 0 : i32
    return %c0_i32, %c0_i32_0 : i32, i32
  }
  func.func @transform_2(%arg0: i32, %arg1: i32) -> (i32, i32, i32) {
    %c0_i32 = arith.constant 0 : i32
    %c0_i32_0 = arith.constant 0 : i32
    return %arg0, %arg1, %c0_i32 : i32, i32, i32
  }
  func.func @transform_3(%arg0: i32, %arg1: i32) -> (i32, i32, i32) {
    %c0_i32 = arith.constant 0 : i32
    %c0_i32_0 = arith.constant 0 : i32
    return %arg0, %arg1, %c0_i32 : i32, i32, i32
  }
}

</mosaic_0001>

<llo_original>
// kernel: tpu_custom_call.1
$region0: #{tpu_custom_call.1}
  #allocation0 [shape = 'u32[]', space=smem, size = 0x4, offset = 0x4, fixed_abs, tag = 'smem constant byte address 0x4 - core index']
  #allocation1 [shape = 'u32[144,128]{1,0:T(1,128)}', space=vmem, size = 0x12000, scoped, tag = 'internal scratch']
  %s0 = inlined_call_operand.hbm [shape: f32[2,8,32], index: 0, kind: input, shape index: {}]
  %s1 = inlined_call_operand.hbm [shape: f32[32,64], index: 1, kind: input, shape index: {}]
  %s2 = inlined_call_operand.hbm [shape: f32[2,8,32], index: 2, kind: output, shape index: {0}]
  %s3 = inlined_call_operand.hbm [shape: f32[2,8,32], index: 3, kind: output, shape index: {1}]
  %4 = xla_tuple %s2, %s3
  %s5 = sld [smem:[#allocation0]]
  $region57: #{tpu_custom_call.1} parent=0
    _
  %s7 = ssub.s32 1, %s5
  %s8 = scalar_select 0, %s7, %s5
  $region1: #{tpu_custom_call.1} parent=0
    #allocation2 [shape = 'u8[8192]{0}', space=vmem, size = 0x2000, scoped, tag = 'input window, operand 0']
    #allocation3 [shape = 's32[2]{0}', space=sflag, size = 0x8, scoped, tag = 'scoped memory for tpu_custom_call.1']
    #allocation4 [shape = 's32[2]{0}', space=sflag, size = 0x8, scoped, tag = 'scoped memory for tpu_custom_call.1']
    #allocation5 [shape = 'u8[16384]{0}', space=vmem, size = 0x4000, scoped, tag = 'input window, operand 1, single buffered']
    #allocation6 [shape = 's32[1]{0}', space=sflag, size = 0x4, scoped, tag = 'scoped memory for tpu_custom_call.1']
    #allocation7 [shape = 'u8[8192]{0}', space=vmem, size = 0x2000, scoped, tag = 'output window, operand 0']
    #allocation8 [shape = 'u8[8192]{0}', space=vmem, size = 0x2000, scoped, tag = 'output window, operand 1']
    #allocation9 [shape = 's32[2]{0}', space=sflag, size = 0x8, scoped, tag = 'scoped memory for tpu_custom_call.1']
    %9 = vsyncpa [#allocation3], 0
    %s10 = scalar_lea.sflag [#allocation3], 1
    %11 = vsyncpa %s10, 0
    %12 = vsyncpa [#allocation6], 0
    %13 = vsyncpa [#allocation4], 0
    %s14 = scalar_lea.sflag [#allocation4], 1
    %15 = vsyncpa %s14, 0
    %16 = vsyncpa [#allocation9], 0
    %s17 = scalar_lea.sflag [#allocation9], 1
    %18 = vsyncpa %s17, 0
    loop: start=0, step=1, limit=4
    $region2: #{tpu_custom_call.1} parent=1 // loop_pre_header
      _
    $region3: #{tpu_custom_call.1} parent=1 // loop_header
      %s20 = sphi 0, %s24
      %p21 = scmp.ge.s32.totalorder %s20, 4
      %s27 = sphi 0, %s39
      %s28 = sphi 0, %s35
      %s29 = sphi 0, %s27
      %s30 = sphi 0, %s28
      %s31 = sphi 0, %s29
      %s32 = sphi 0, %s30
      %s44 = sphi 0, %s46
      %s47 = sphi 0, %s44
      %s48 = sphi 0, %s47
      %s64 = sphi 0, %s48
      %s68 = sphi 0, %s68
      %s70 = sphi 0, %s68
      %s71 = sphi 0, %s70
      %s85 = sphi 0, %s71
      %s93 = sphi 0, %s95
      %s96 = sphi 0, %s93
      %s97 = sphi 0, %s96
      %s113 = sphi 0, %s97
      %s121 = sphi 0, %s123
      %s124 = sphi 0, %s121
      %s125 = sphi 0, %s124
      %s141 = sphi 0, %s125
    $region4: #{tpu_custom_call.1} parent=1 // loop_header_branch
      %23 = sbr.rel (%p21) target = $region8
    $region5: #{tpu_custom_call.1} parent=1 // loop_body
      %s25 = ssub.s32 %s20, 1
      %s26 = ssub.s32 %s20, 2
      %s33 = sadd.s32 1, %s28
      %p34 = scmp.ge.s32.totalorder %s33, 1
      %s35 = scalar_select %p34, 0, %s33
      %s36 = sadd.s32 1, %s27
      %s37 = scalar_select %p34, %s36, %s27
      %p38 = scmp.ge.s32.totalorder %s37, 2
      %s39 = scalar_select %p38, 0, %s37
      %s40 = ssub.s32 %s27, %s39
      %s41 = ssub.s32 %s28, %s35
      %s42 = sor.u32 %s40, %s41
      %p43 = scmp.eq.s32.totalorder %s42, 0
      %s45 = sadd.s32 %s44, 1
      %s46 = scalar_select %p43, %s44, %s45
      %p49 = pneg %p43
      %p50 = scmp.eq.s32.totalorder %s20, 1
      %p51 = por %p49, %p50
      %p52 = scmp.ne.s32.totalorder %s44, %s47
      %p53 = scmp.eq.s32.totalorder %s20, 0
      %p54 = por %p52, %p53
      %p55 = scmp.ne.s32.totalorder %s44, %s47
      %p56 = scmp.eq.s32.totalorder %s25, 1
      %p57 = por %p55, %p56
      %p58 = scmp.ne.s32.totalorder %s47, %s48
      %p59 = scmp.eq.s32.totalorder %s25, 0
      %p60 = por %p58, %p59
      %p61 = scmp.ne.s32.totalorder %s47, %s48
      %p62 = scmp.eq.s32.totalorder %s26, 1
      %p63 = por %p61, %p62
      %p65 = scmp.ne.s32.totalorder %s48, %s64
      %p66 = scmp.eq.s32.totalorder %s26, 0
      %p67 = por %p65, %p66
      %s69 = sadd.s32 %s68, 1
      %p72 = scmp.eq.s32.totalorder %s20, 1
      %p73 = scmp.ne.s32.totalorder %s68, %s70
      %p74 = scmp.eq.s32.totalorder %s20, 0
      %p75 = por %p73, %p74
      %p76 = scmp.ne.s32.totalorder %s68, %s70
      %p77 = scmp.eq.s32.totalorder %s25, 1
      %p78 = por %p76, %p77
      %p79 = scmp.ne.s32.totalorder %s70, %s71
      %p80 = scmp.eq.s32.totalorder %s25, 0
      %p81 = por %p79, %p80
      %p82 = scmp.ne.s32.totalorder %s70, %s71
      %p83 = scmp.eq.s32.totalorder %s26, 1
      %p84 = por %p82, %p83
      %p86 = scmp.ne.s32.totalorder %s71, %s85
      %p87 = scmp.eq.s32.totalorder %s26, 0
      %p88 = por %p86, %p87
      %s89 = ssub.s32 %s27, %s39
      %s90 = ssub.s32 %s28, %s35
      %s91 = sor.u32 %s89, %s90
      %p92 = scmp.eq.s32.totalorder %s91, 0
      %s94 = sadd.s32 %s93, 1
      %s95 = scalar_select %p92, %s93, %s94
      %p98 = pneg %p92
      %p99 = scmp.eq.s32.totalorder %s20, 1
      %p100 = por %p98, %p99
      %p101 = scmp.ne.s32.totalorder %s93, %s96
      %p102 = scmp.eq.s32.totalorder %s20, 0
      %p103 = por %p101, %p102
      %p104 = scmp.ne.s32.totalorder %s93, %s96
      %p105 = scmp.eq.s32.totalorder %s25, 1
      %p106 = por %p104, %p105
      %p107 = scmp.ne.s32.totalorder %s96, %s97
      %p108 = scmp.eq.s32.totalorder %s25, 0
      %p109 = por %p107, %p108
      %p110 = scmp.ne.s32.totalorder %s96, %s97
      %p111 = scmp.eq.s32.totalorder %s26, 1
      %p112 = por %p110, %p111
      %p114 = scmp.ne.s32.totalorder %s97, %s113
      %p115 = scmp.eq.s32.totalorder %s26, 0
      %p116 = por %p114, %p115
      %s117 = ssub.s32 %s27, %s39
      %s118 = ssub.s32 %s28, %s35
      %s119 = sor.u32 %s117, %s118
      %p120 = scmp.eq.s32.totalorder %s119, 0
      %s122 = sadd.s32 %s121, 1
      %s123 = scalar_select %p120, %s121, %s122
      %p126 = pneg %p120
      %p127 = scmp.eq.s32.totalorder %s20, 1
      %p128 = por %p126, %p127
      %p129 = scmp.ne.s32.totalorder %s121, %s124
      %p130 = scmp.eq.s32.totalorder %s20, 0
      %p131 = por %p129, %p130
      %p132 = scmp.ne.s32.totalorder %s121, %s124
      %p133 = scmp.eq.s32.totalorder %s25, 1
      %p134 = por %p132, %p133
      %p135 = scmp.ne.s32.totalorder %s124, %s125
      %p136 = scmp.eq.s32.totalorder %s25, 0
      %p137 = por %p135, %p136
      %p138 = scmp.ne.s32.totalorder %s124, %s125
      %p139 = scmp.eq.s32.totalorder %s26, 1
      %p140 = por %p138, %p139
      %p142 = scmp.ne.s32.totalorder %s125, %s141
      %p143 = scmp.eq.s32.totalorder %s26, 0
      %p144 = por %p142, %p143
      %p145 = scmp.le.s32.totalorder 1, %s20
      %p146 = scmp.lt.s32.totalorder %s20, 3
      %p147 = pnand %p145, %p146
      %p148 = pneg %p147
      // Predicated region
      $region9: #{tpu_custom_call.1} parent=5 // pred_check
        _
      $region10: #{tpu_custom_call.1} parent=5 // pred_check_branch
        %150 = sbr.rel (%p147) target = $region12
      $region11: #{tpu_custom_call.1} parent=5 // pred_region
        %s151 = ssub.s32 %s20, 1
        // Predicated region
        $region13: #{tpu_custom_call.1} parent=11 // pred_check
          %p152 = pneg %p81
        $region14: #{tpu_custom_call.1} parent=11 // pred_check_branch
          %154 = sbr.rel (%p152) target = $region16
        $region15: #{tpu_custom_call.1} parent=11 // pred_region
          %s156 = ssub.s32 512, 512
          %157 = vsyncadd [#allocation6], %s156
          %s158 = sshll.u32 [#allocation5], 4
          %s159 = int_to_ptr.vmem [resolvable:$true] %s158
          %164 = dma.hbm_to_vmem [thread:$0]  %s1, 512, %s159, [#allocation6], 128, 128, 8
        $region16: #{tpu_custom_call.1} parent=11 // pred_fallthru
          _
      $region12: #{tpu_custom_call.1} parent=5 // pred_fallthru
        _
      %p165 = scmp.lt.s32.totalorder %s20, 2
      // Predicated region
      $region17: #{tpu_custom_call.1} parent=5 // pred_check
        %p166 = pneg %p165
      $region18: #{tpu_custom_call.1} parent=5 // pred_check_branch
        %168 = sbr.rel (%p166) target = $region20
      $region19: #{tpu_custom_call.1} parent=5 // pred_region
        // Predicated region
        $region21: #{tpu_custom_call.1} parent=19 // pred_check
          %p169 = pneg %p54
        $region22: #{tpu_custom_call.1} parent=19 // pred_check_branch
          %171 = sbr.rel (%p169) target = $region24
        $region23: #{tpu_custom_call.1} parent=19 // pred_region
          %s172 = sand.u32 %s44, 1
          %s173 = scalar_lea.sflag [#allocation3], %s172
          %s174 = sand.u32 %s44, 1
          %s175 = smul.addr %s174, 8
          %s176 = scalar_lea.vmem [#allocation2], %s175
          %s178 = ssub.s32 128, 128
          %179 = vsyncadd %s173, %s178
          %s180 = sadd.s32 %s28, %s27
          %s181 = smul.addr %s180, 128
          %s182 = scalar_lea.hbm %s0, %s181
          %s184 = sshll.u32 %s176, 4
          %s185 = int_to_ptr.vmem [resolvable:$true] %s184
          %187 = dma.hbm_to_vmem [thread:$0]  %s182, 128, %s185, %s173
        $region24: #{tpu_custom_call.1} parent=19 // pred_fallthru
          _
      $region20: #{tpu_custom_call.1} parent=5 // pred_fallthru
        _
      %p188 = scmp.le.s32.totalorder 1, %s20
      %p189 = scmp.lt.s32.totalorder %s20, 3
      %p190 = pnand %p188, %p189
      %p191 = pneg %p190
      // Predicated region
      $region25: #{tpu_custom_call.1} parent=5 // pred_check
        _
      $region26: #{tpu_custom_call.1} parent=5 // pred_check_branch
        %193 = sbr.rel (%p190) target = $region28
      $region27: #{tpu_custom_call.1} parent=5 // pred_region
        %s194 = ssub.s32 %s20, 1
        %s195 = sand.u32 %s47, 1
        %s196 = scalar_lea.sflag [#allocation3], %s195
        %s197 = sand.u32 %s47, 1
        %s198 = smul.addr %s197, 8
        %s199 = scalar_lea.vmem [#allocation2], %s198
        // Predicated region
        $region29: #{tpu_custom_call.1} parent=27 // pred_check
          %p200 = pneg %p60
        $region30: #{tpu_custom_call.1} parent=27 // pred_check_branch
          %202 = sbr.rel (%p200) target = $region32
        $region31: #{tpu_custom_call.1} parent=27 // pred_region
          %203 = dma.done %s196, 128
        $region32: #{tpu_custom_call.1} parent=27 // pred_fallthru
          _
        // Predicated region
        $region33: #{tpu_custom_call.1} parent=27 // pred_check
          %p204 = pneg %p81
        $region34: #{tpu_custom_call.1} parent=27 // pred_check_branch
          %206 = sbr.rel (%p204) target = $region36
        $region35: #{tpu_custom_call.1} parent=27 // pred_region
          %207 = dma.done [#allocation6], 512
        $region36: #{tpu_custom_call.1} parent=27 // pred_fallthru
          _
        %s208 = sand.u32 %s47, 1
        %s209 = scalar_lea.sflag [#allocation3], %s208
        %s210 = sand.u32 %s47, 1
        %s211 = smul.addr %s210, 8
        %s212 = scalar_lea.vmem [#allocation2], %s211
        %p213 = pneg %p60
        %p214 = pneg %p57
        %p215 = pneg %p81
        %p216 = pneg %p78
        %p217 = pneg %p109
        %p218 = pneg %p106
        %s219 = sand.u32 %s96, 1
        %s220 = scalar_lea.sflag [#allocation4], %s219
        %s221 = sand.u32 %s96, 1
        %s222 = smul.addr %s221, 8
        %s223 = scalar_lea.vmem [#allocation7], %s222
        %p224 = pneg %p137
        %p225 = pneg %p134
        %s226 = sand.u32 %s124, 1
        %s227 = scalar_lea.sflag [#allocation9], %s226
        %s228 = sand.u32 %s124, 1
        %s229 = smul.addr %s228, 8
        %s230 = scalar_lea.vmem [#allocation8], %s229
        %v231 = vld [vmem:[%s199] sm:$0xff]
        %v232 = vld [vmem:[#allocation5] sm:$0xff]
        %v233 = vld [vmem:[#allocation5 + $0x8] sm:$0xff]
        %v234 = vld [vmem:[#allocation5 + $0x10] sm:$0xff]
        %v235 = vld [vmem:[#allocation5 + $0x18] sm:$0xff]
        %vm236 = vcmask 261120
        %v238 = vsel %vm236, %v231, 0
        %240 = vmatprep.subr.mxu0 0.0
        %241 = vmatpush1.msra.mxu0 0.0
        %242 = vmatprep.subr.mxu0 0.0
        %243 = vmatpush1.msra.mxu0 0.0
        %244 = vmatprep.subr.mxu0 0.0
        %245 = vmatpush1.msra.mxu0 0.0
        %246 = vmatprep.subr.mxu0 0.0
        %247 = vmatpush1.msra.mxu0 0.0
        %248 = vmatprep.subr.mxu0 0.0
        %249 = vmatpush1.msra.mxu0 0.0
        %250 = vmatprep.subr.mxu0 0.0
        %251 = vmatpush1.msra.mxu0 0.0
        %252 = vmatprep.subr.mxu0 0.0
        %253 = vmatpush1.msra.mxu0 0.0
        %254 = vmatprep.subr.mxu0 0.0
        %255 = vmatpush1.msra.mxu0 0.0
        %256 = vmatprep.subr.mxu0 0.0
        %257 = vmatpush1.msra.mxu0 0.0
        %258 = vmatprep.subr.mxu0 0.0
        %259 = vmatpush1.msra.mxu0 0.0
        %260 = vmatprep.subr.mxu0 0.0
        %261 = vmatpush1.msra.mxu0 0.0
        %262 = vmatprep.subr.mxu0 0.0
        %263 = vmatpush1.msra.mxu0 0.0
        %264 = vmatprep.subr.mxu0 0.0
        %265 = vmatpush1.msra.mxu0 %v235
        %266 = vmatprep.subr.mxu0 0.0
        %267 = vmatpush1.msra.mxu0 %v234
        %268 = vmatprep.subr.mxu0 0.0
        %269 = vmatpush1.msra.mxu0 %v233
        %270 = vmatprep.subr.mxu0 0.0
        %271 = vmatpush1.msra.mxu0 %v232
        %272 = vmatprep.subr.mxu0 0.0
        %273 = vmatpush2.msra.mxu0 0.0
        %274 = vmatprep.subr.mxu0 0.0
        %275 = vmatpush2.msra.mxu0 0.0
        %276 = vmatprep.subr.mxu0 0.0
        %277 = vmatpush2.msra.mxu0 0.0
        %278 = vmatprep.subr.mxu0 0.0
        %279 = vmatpush2.msra.mxu0 0.0
        %280 = vmatprep.subr.mxu0 0.0
        %281 = vmatpush2.msra.mxu0 0.0
        %282 = vmatprep.subr.mxu0 0.0
        %283 = vmatpush2.msra.mxu0 0.0
        %284 = vmatprep.subr.mxu0 0.0
        %285 = vmatpush2.msra.mxu0 0.0
        %286 = vmatprep.subr.mxu0 0.0
        %287 = vmatpush2.msra.mxu0 0.0
        %288 = vmatprep.subr.mxu0 0.0
        %289 = vmatpush2.msra.mxu0 0.0
        %290 = vmatprep.subr.mxu0 0.0
        %291 = vmatpush2.msra.mxu0 0.0
        %292 = vmatprep.subr.mxu0 0.0
        %293 = vmatpush2.msra.mxu0 0.0
        %294 = vmatprep.subr.mxu0 0.0
        %295 = vmatpush2.msra.mxu0 0.0
        %296 = vmatprep.subr.mxu0 0.0
        %297 = vmatpush2.msra.mxu0 0.0
        %298 = vmatprep.subr.mxu0 0.0
        %299 = vmatpush2.msra.mxu0 0.0
        %300 = vmatprep.subr.mxu0 0.0
        %301 = vmatpush2.msra.mxu0 0.0
        %302 = vmatprep.subr.mxu0 0.0
        %303 = vmatpush2.msra.mxu0 0.0
        %304 = vmatprep.mubr.f32.mxu0 0.0
        %305 = vmatmul.mubr.f32.gmra.mxu0 %v238
        %v306 = vpop.f32.mrf.mxu0
        %v307 = vadd.f32 0.0, %v306
        %v308 = vpop.f32.mrf.mxu0
        %309 = vdwg.mxu0
        %310 = vst.msk [vmem:[%s223] sm:$0xff] %vm236, %v307
        %v311 = vld [vmem:[#allocation5] sm:$0xff]
        %v312 = vld [vmem:[#allocation5 + $0x8] sm:$0xff]
        %v313 = vld [vmem:[#allocation5 + $0x10] sm:$0xff]
        %v314 = vld [vmem:[#allocation5 + $0x18] sm:$0xff]
        %319 = vrot.lane.b32.xlu0 %v311, 96
        %v320 = vpop.permute.xlu0 %319
        %321 = vrot.lane.b32.xlu0 %v312, 96
        %v322 = vpop.permute.xlu0 %321
        %323 = vrot.lane.b32.xlu0 %v313, 96
        %v324 = vpop.permute.xlu0 %323
        %325 = vrot.lane.b32.xlu0 %v314, 96
        %v326 = vpop.permute.xlu0 %325
        %331 = vmatprep.subr.mxu0 0.0
        %332 = vmatpush1.msra.mxu0 0.0
        %333 = vmatprep.subr.mxu0 0.0
        %334 = vmatpush1.msra.mxu0 0.0
        %335 = vmatprep.subr.mxu0 0.0
        %336 = vmatpush1.msra.mxu0 0.0
        %337 = vmatprep.subr.mxu0 0.0
        %338 = vmatpush1.msra.mxu0 0.0
        %339 = vmatprep.subr.mxu0 0.0
        %340 = vmatpush1.msra.mxu0 0.0
        %341 = vmatprep.subr.mxu0 0.0
        %342 = vmatpush1.msra.mxu0 0.0
        %343 = vmatprep.subr.mxu0 0.0
        %344 = vmatpush1.msra.mxu0 0.0
        %345 = vmatprep.subr.mxu0 0.0
        %346 = vmatpush1.msra.mxu0 0.0
        %347 = vmatprep.subr.mxu0 0.0
        %348 = vmatpush1.msra.mxu0 0.0
        %349 = vmatprep.subr.mxu0 0.0
        %350 = vmatpush1.msra.mxu0 0.0
        %351 = vmatprep.subr.mxu0 0.0
        %352 = vmatpush1.msra.mxu0 0.0
        %353 = vmatprep.subr.mxu0 0.0
        %354 = vmatpush1.msra.mxu0 0.0
        %355 = vmatprep.subr.mxu0 0.0
        %356 = vmatpush1.msra.mxu0 %v326
        %357 = vmatprep.subr.mxu0 0.0
        %358 = vmatpush1.msra.mxu0 %v324
        %359 = vmatprep.subr.mxu0 0.0
        %360 = vmatpush1.msra.mxu0 %v322
        %361 = vmatprep.subr.mxu0 0.0
        %362 = vmatpush1.msra.mxu0 %v320
        %363 = vmatprep.subr.mxu0 0.0
        %364 = vmatpush2.msra.mxu0 0.0
        %365 = vmatprep.subr.mxu0 0.0
        %366 = vmatpush2.msra.mxu0 0.0
        %367 = vmatprep.subr.mxu0 0.0
        %368 = vmatpush2.msra.mxu0 0.0
        %369 = vmatprep.subr.mxu0 0.0
        %370 = vmatpush2.msra.mxu0 0.0
        %371 = vmatprep.subr.mxu0 0.0
        %372 = vmatpush2.msra.mxu0 0.0
        %373 = vmatprep.subr.mxu0 0.0
        %374 = vmatpush2.msra.mxu0 0.0
        %375 = vmatprep.subr.mxu0 0.0
        %376 = vmatpush2.msra.mxu0 0.0
        %377 = vmatprep.subr.mxu0 0.0
        %378 = vmatpush2.msra.mxu0 0.0
        %379 = vmatprep.subr.mxu0 0.0
        %380 = vmatpush2.msra.mxu0 0.0
        %381 = vmatprep.subr.mxu0 0.0
        %382 = vmatpush2.msra.mxu0 0.0
        %383 = vmatprep.subr.mxu0 0.0
        %384 = vmatpush2.msra.mxu0 0.0
        %385 = vmatprep.subr.mxu0 0.0
        %386 = vmatpush2.msra.mxu0 0.0
        %387 = vmatprep.subr.mxu0 0.0
        %388 = vmatpush2.msra.mxu0 0.0
        %389 = vmatprep.subr.mxu0 0.0
        %390 = vmatpush2.msra.mxu0 0.0
        %391 = vmatprep.subr.mxu0 0.0
        %392 = vmatpush2.msra.mxu0 0.0
        %393 = vmatprep.subr.mxu0 0.0
        %394 = vmatpush2.msra.mxu0 0.0
        %395 = vmatprep.mubr.f32.mxu0 0.0
        %396 = vmatmul.mubr.f32.gmra.mxu0 %v238
        %v397 = vpop.f32.mrf.mxu0
        %v398 = vadd.f32 0.0, %v397
        %v399 = vpop.f32.mrf.mxu0
        %400 = vdwg.mxu0
        %401 = vst.msk [vmem:[%s230] sm:$0xff] %vm236, %v398
        %s402 = sand.u32 %s96, 1
        %s403 = scalar_lea.sflag [#allocation4], %s402
        %s404 = sand.u32 %s96, 1
        %s405 = smul.addr %s404, 8
        %s406 = scalar_lea.vmem [#allocation7], %s405
        %s407 = sand.u32 %s124, 1
        %s408 = scalar_lea.sflag [#allocation9], %s407
        %s409 = sand.u32 %s124, 1
        %s410 = smul.addr %s409, 8
        %s411 = scalar_lea.vmem [#allocation8], %s410
        // Predicated region
        $region37: #{tpu_custom_call.1} parent=27 // pred_check
          %p412 = pneg %p106
        $region38: #{tpu_custom_call.1} parent=27 // pred_check_branch
          %414 = sbr.rel (%p412) target = $region40
        $region39: #{tpu_custom_call.1} parent=27 // pred_region
          %s416 = ssub.s32 128, 128
          %417 = vsyncadd %s403, %s416
          %s418 = sadd.s32 %s30, %s29
          %s419 = smul.addr %s418, 128
          %s420 = scalar_lea.hbm %s2, %s419
          %s422 = sshll.u32 %s406, 4
          %s423 = int_to_ptr.vmem [resolvable:$true] %s422
          %425 = dma.vmem_to_hbm [thread:$0]  %s423, 128, %s420, %s403
        $region40: #{tpu_custom_call.1} parent=27 // pred_fallthru
          _
        // Predicated region
        $region41: #{tpu_custom_call.1} parent=27 // pred_check
          %p426 = pneg %p134
        $region42: #{tpu_custom_call.1} parent=27 // pred_check_branch
          %428 = sbr.rel (%p426) target = $region44
        $region43: #{tpu_custom_call.1} parent=27 // pred_region
          %s430 = ssub.s32 128, 128
          %431 = vsyncadd %s408, %s430
          %s432 = sadd.s32 %s30, %s29
          %s433 = smul.addr %s432, 128
          %s434 = scalar_lea.hbm %s3, %s433
          %s436 = sshll.u32 %s411, 4
          %s437 = int_to_ptr.vmem [resolvable:$true] %s436
          %439 = dma.vmem_to_hbm [thread:$0]  %s437, 128, %s434, %s408
        $region44: #{tpu_custom_call.1} parent=27 // pred_fallthru
          _
      $region28: #{tpu_custom_call.1} parent=5 // pred_fallthru
        _
      %p440 = scmp.le.s32.totalorder 2, %s20
      // Predicated region
      $region45: #{tpu_custom_call.1} parent=5 // pred_check
        %p441 = pneg %p440
      $region46: #{tpu_custom_call.1} parent=5 // pred_check_branch
        %443 = sbr.rel (%p441) target = $region48
      $region47: #{tpu_custom_call.1} parent=5 // pred_region
        %s444 = ssub.s32 %s20, 2
        // Predicated region
        $region49: #{tpu_custom_call.1} parent=47 // pred_check
          %p445 = pneg %p112
        $region50: #{tpu_custom_call.1} parent=47 // pred_check_branch
          %447 = sbr.rel (%p445) target = $region52
        $region51: #{tpu_custom_call.1} parent=47 // pred_region
          %s448 = sand.u32 %s97, 1
          %s449 = scalar_lea.sflag [#allocation4], %s448
          %s450 = sand.u32 %s97, 1
          %s451 = smul.addr %s450, 8
          %s452 = scalar_lea.vmem [#allocation7], %s451
          %453 = dma.done %s449, 128
        $region52: #{tpu_custom_call.1} parent=47 // pred_fallthru
          _
        // Predicated region
        $region53: #{tpu_custom_call.1} parent=47 // pred_check
          %p454 = pneg %p140
        $region54: #{tpu_custom_call.1} parent=47 // pred_check_branch
          %456 = sbr.rel (%p454) target = $region56
        $region55: #{tpu_custom_call.1} parent=47 // pred_region
          %s457 = sand.u32 %s125, 1
          %s458 = scalar_lea.sflag [#allocation9], %s457
          %s459 = sand.u32 %s125, 1
          %s460 = smul.addr %s459, 8
          %s461 = scalar_lea.vmem [#allocation8], %s460
          %462 = dma.done %s458, 128
        $region56: #{tpu_custom_call.1} parent=47 // pred_fallthru
          _
      $region48: #{tpu_custom_call.1} parent=5 // pred_fallthru
        _
    $region6: #{tpu_custom_call.1} parent=1 // loop_footer
      %s24 = sadd.s32 1, %s20
    $region7: #{tpu_custom_call.1} parent=1 // loop_footer_branch
      %19 = sbr.rel target = $region3
    $region8: #{tpu_custom_call.1} parent=1 // loop_exit
      _
    %463 = vsyncpa [#allocation3], 1
    %s464 = scalar_lea.sflag [#allocation3], 1
    %465 = vsyncpa %s464, 1
    %466 = vsyncpa [#allocation6], 1
    %467 = vsyncpa [#allocation4], 1
    %s468 = scalar_lea.sflag [#allocation4], 1
    %469 = vsyncpa %s468, 1
    %470 = vsyncpa [#allocation9], 1
    %s471 = scalar_lea.sflag [#allocation9], 1
    %472 = vsyncpa %s471, 1

</llo_original>
